<compile_context>
chip_gen: v5e
topology: v5e:2x2
jax: 0.10.0
libtpu: 0.0.40
codegen_flags: <defaults>
</compile_context>

<pallas_src>
import functools

import jax
import jax.numpy as jnp
from jax import lax
from jax.experimental import pallas as pl
from jax.experimental.pallas import tpu as pltpu

_LANE = 128
_SUBLANE = 8


def _round_up(x, m):
    return ((x + m - 1) // m) * m


def _cdiv(a, b):
    return -(-a // b)


def _device_kind():
    try:
        return jax.devices()[0].device_kind.lower()
    except Exception:
        return ""


def _is_v7(kind):
    return ("v7" in kind) or ("7x" in kind)


def _default_rows_per_chunk(kind):
    # Memory-bound kernel: pick a chunk big enough to amortize the ~0.35us
    # per-grid-step overhead against the generation's HBM feed rate.  The
    # explicit vmem_limit_bytes below keeps the double-buffered inputs legal
    # on every generation (v5e/v6e: ~24 MiB needed, v7x f32: ~40 MiB < 64 MiB).
    if _is_v7(kind):
        return 16384    # 8 MiB f32 per input block (3.2 TB/s HBM)
    return 8192         # v5e / v6e


def _row_multiple(*dtypes):
    # Second-to-last block dim must be a multiple of 8 * (32 / bitwidth)
    # unless the block equals the full array dim (sub-32-bit packs sublanes).
    m = _SUBLANE
    for dt in dtypes:
        packing = max(1, 4 // jnp.dtype(dt).itemsize)
        m = max(m, _SUBLANE * packing)
    return m


def _dice_partial_kernel(logits_ref, target_ref, out_ref, acc_i, acc_u, *,
                         length, chunk_rows, n_inner, needs_mask):
    k = pl.program_id(2)
    n_k = pl.num_programs(2)

    @pl.when(k == 0)
    def _():
        acc_i[...] = jnp.zeros_like(acc_i)
        acc_u[...] = jnp.zeros_like(acc_u)

    probs = jax.nn.sigmoid(logits_ref[0].astype(jnp.float32))   # (chunk_rows, 128)
    tgt = target_ref[0].astype(jnp.float32)

    def accumulate(p, t):
        inter = p * t
        union = p + t          # sum(probs) + sum(target) fused into one reduce
        if chunk_rows % _SUBLANE == 0:
            # Lane/sublane-resident partials: reduce only across groups of 8
            # rows (pure VPU adds into the (8,128) accumulators); the XLU /
            # cross-lane reduce is deferred to the wrapper.
            g = chunk_rows // _SUBLANE
            acc_i[...] += jnp.sum(inter.reshape(g, _SUBLANE, _LANE), axis=0)
            acc_u[...] += jnp.sum(union.reshape(g, _SUBLANE, _LANE), axis=0)
        else:
            # Odd single-block shapes: plain sublane reduce into row 0.
            acc_i[0:1, :] += jnp.sum(inter, axis=0, keepdims=True)
            acc_u[0:1, :] += jnp.sum(union, axis=0, keepdims=True)

    if needs_mask:
        o = pl.program_id(1)
        blk = o * n_inner + k                                  # logical row block
        boundary = (blk + 1) * (chunk_rows * _LANE) > length   # traced bool

        @pl.when(jnp.logical_not(boundary))
        def _():
            accumulate(probs, tgt)

        @pl.when(boundary)
        def _():
            # Ragged tail / out-of-range rows: mask by flat element index.
            # Covers the <128-lane pad, the partial last row block, and any
            # clamped fully-out-of-range block of the row split.
            row = lax.broadcasted_iota(jnp.int32, (chunk_rows, _LANE), 0)
            lane = lax.broadcasted_iota(jnp.int32, (chunk_rows, _LANE), 1)
            flat = (blk * chunk_rows + row) * _LANE + lane
            valid = flat < length
            accumulate(jnp.where(valid, probs, 0.0),
                       jnp.where(valid, tgt, 0.0))
    else:
        accumulate(probs, tgt)

    @pl.when(k == n_k - 1)
    def _():
        out_ref[0, 0, 0:_SUBLANE, :] = acc_i[...]
        out_ref[0, 0, _SUBLANE:2 * _SUBLANE, :] = acc_u[...]


def dice_loss(logits, target, smooth=1e-6, rows_per_chunk=None, n_outer=None):
    """Pallas TPU implementation of Dice_Loss.forward (returns a scalar).

    Accepts f32 / bf16 logits and f32 / bf16 / int8 targets; the kernel
    upcasts to f32 internally, so narrower inputs halve HBM traffic.
    """
    assert target.shape == logits.shape
    N = int(logits.shape[0])
    L = 1
    for d in logits.shape[1:]:
        L *= int(d)

    kind = _device_kind()
    if rows_per_chunk is None:
        rows_per_chunk = _default_rows_per_chunk(kind)

    # Lane-dense (rows, 128) view.  Pad only to the next 128-lane multiple
    # when needed (no chunk-multiple padding, tail is masked in-kernel).
    rows = _cdiv(L, _LANE)
    L_pad = rows * _LANE
    lf = logits.reshape(N, L)
    tf = target.reshape(N, L)
    if L_pad != L:
        lf = jnp.pad(lf, ((0, 0), (0, L_pad - L)))
        tf = jnp.pad(tf, ((0, 0), (0, L_pad - L)))
    lf = lf.reshape(N, rows, _LANE)
    tf = tf.reshape(N, rows, _LANE)

    mult = _row_multiple(lf.dtype, tf.dtype)

    # Optional per-sample row split so v7x's two TensorCores both get work
    # when the (parallel) sample axis alone cannot feed them.
    if n_outer is None:
        n_outer = 2 if (_is_v7(kind) and N == 1) else 1
    n_outer = max(1, min(int(n_outer), max(1, rows // mult)))

    chunk_rows = min(_round_up(int(rows_per_chunk), mult),
                     _round_up(_cdiv(rows, n_outer), mult))
    if n_outer == 1 and rows <= chunk_rows:
        chunk_rows = rows           # single full-dim block: no alignment needed
    n_blocks = _cdiv(rows, chunk_rows)
    n_outer = min(n_outer, n_blocks)
    n_inner = _cdiv(n_blocks, n_outer)

    needs_mask = (n_outer * n_inner * chunk_rows * _LANE) != L

    kernel = functools.partial(
        _dice_partial_kernel, length=L, chunk_rows=chunk_rows,
        n_inner=n_inner, needs_mask=needs_mask)

    def in_map(i, o, k):
        # Clamp so a fully out-of-range trailing block re-reads the last real
        # block (its contribution is masked to zero inside the kernel).
        return (i, jnp.minimum(o * n_inner + k, n_blocks - 1), 0)

    in_block_bytes = chunk_rows * _LANE * (lf.dtype.itemsize + tf.dtype.itemsize)
    vmem_limit = max(32 << 20, 2 * in_block_bytes + (8 << 20))

    out_elems = N * n_outer * 2 * _SUBLANE * _LANE
    cost = pl.CostEstimate(
        flops=10 * N * L,
        transcendentals=N * L,
        bytes_accessed=N * L_pad * (lf.dtype.itemsize + tf.dtype.itemsize)
        + out_elems * 4,
    )

    partials = pl.pallas_call(
        kernel,
        out_shape=jax.ShapeDtypeStruct((N, n_outer, 2 * _SUBLANE, _LANE),
                                       jnp.float32),
        grid_spec=pltpu.PrefetchScalarGridSpec(
            num_scalar_prefetch=0,
            grid=(N, n_outer, n_inner),          # reduction (chunk) axis last
            in_specs=[
                pl.BlockSpec((1, chunk_rows, _LANE), in_map),
                pl.BlockSpec((1, chunk_rows, _LANE), in_map),
            ],
            out_specs=pl.BlockSpec((1, 1, 2 * _SUBLANE, _LANE),
                                   lambda i, o, k: (i, o, 0, 0)),
            scratch_shapes=[pltpu.VMEM((_SUBLANE, _LANE), jnp.float32),
                            pltpu.VMEM((_SUBLANE, _LANE), jnp.float32)],
        ),
        compiler_params=pltpu.CompilerParams(
            dimension_semantics=("parallel", "parallel", "arbitrary"),
            vmem_limit_bytes=int(vmem_limit),
        ),
        cost_estimate=cost,
    )(lf, tf)

    # Tiny epilogue in plain JAX: cross-lane reduce of the per-core partials,
    # dice ratio, and the batch mean.
    inter = jnp.sum(partials[:, :, :_SUBLANE, :], axis=(1, 2, 3))
    union = jnp.sum(partials[:, :, _SUBLANE:, :], axis=(1, 2, 3))
    dice = (2.0 * inter + smooth) / (union + smooth)
    return 1.0 - jnp.mean(dice)


def dice_loss_ref(logits, target, smooth=1e-6):
    """Pure-JAX reference matching the PyTorch module."""
    logits = logits.astype(jnp.float32)
    target = target.astype(jnp.float32)
    probs = jax.nn.sigmoid(logits)
    axes = tuple(range(1, logits.ndim))
    intersection = jnp.sum(probs * target, axis=axes)
    union = jnp.sum(probs, axis=axes) + jnp.sum(target, axis=axes)
    dice = (2.0 * intersection + smooth) / (union + smooth)
    return 1.0 - jnp.mean(dice)


if __name__ == "__main__":
    key = jax.random.PRNGKey(0)
    k1, k2, k3, k4, k5, k6, k7, k8 = jax.random.split(key, 8)

    # Primary check: shape implied by the module (NCHW), exact 128-lane tiling.
    N, C, H, W = 2, 4, 16, 16
    logits = jax.random.normal(k1, (N, C, H, W), dtype=jnp.float32)
    target = (jax.random.uniform(k2, (N, C, H, W)) > 0.5).astype(jnp.float32)
    out = jax.block_until_ready(dice_loss(logits, target))
    ref = dice_loss_ref(logits, target)
    assert jnp.allclose(out, ref, atol=1e-5, rtol=1e-5), (out, ref)

    # Multi-chunk reduction + forced two-way per-sample row split (no masking).
    logits_b = jax.random.normal(k3, (2, 4, 64, 64), dtype=jnp.float32)
    target_b = (jax.random.uniform(k4, (2, 4, 64, 64)) > 0.5).astype(jnp.float32)
    out_b = jax.block_until_ready(
        dice_loss(logits_b, target_b, rows_per_chunk=16, n_outer=2))
    ref_b = dice_loss_ref(logits_b, target_b)
    assert jnp.allclose(out_b, ref_b, atol=1e-5, rtol=1e-5), (out_b, ref_b)

    # Ragged size + row split: 128-lane tail pad, in-kernel masking, partial
    # last block, and a clamped fully-out-of-range block.
    logits_r = jax.random.normal(k5, (1, 3, 37, 53), dtype=jnp.float32)
    target_r = (jax.random.uniform(k6, (1, 3, 37, 53)) > 0.5).astype(jnp.float32)
    out_r = jax.block_until_ready(
        dice_loss(logits_r, target_r, rows_per_chunk=16, n_outer=2))
    ref_r = dice_loss_ref(logits_r, target_r)
    assert jnp.allclose(out_r, ref_r, atol=1e-5, rtol=1e-5), (out_r, ref_r)

    # Odd single-block shape (rows not a multiple of 8): fallback accumulate.
    logits_o = jax.random.normal(k7, (2, 1, 13, 100), dtype=jnp.float32)
    target_o = (jax.random.uniform(k8, (2, 1, 13, 100)) > 0.5).astype(jnp.float32)
    out_o = jax.block_until_ready(dice_loss(logits_o, target_o))
    ref_o = dice_loss_ref(logits_o, target_o)
    assert jnp.allclose(out_o, ref_o, atol=1e-5, rtol=1e-5), (out_o, ref_o)

    # bf16 logits + bf16 target (exact 0/1): halves HBM traffic on this
    # memory-bound kernel; the kernel upcasts to f32 internally.
    out_h = jax.block_until_ready(
        dice_loss(logits.astype(jnp.bfloat16), target.astype(jnp.bfloat16)))
    ref_h = dice_loss_ref(logits.astype(jnp.bfloat16), target.astype(jnp.bfloat16))
    assert jnp.allclose(out_h, ref_h, atol=1e-3, rtol=1e-3), (out_h, ref_h)

    print("KERNEL_OK")
</pallas_src>

<mosaic_0001>
module attributes {stable_mosaic.version = 11 : i64} {
  func.func @_dice_partial_kernel(%arg0: i32, %arg1: i32, %arg2: i32, %arg3: memref<1x8x128xf32, #tpu.memory_space<vmem>>, %arg4: memref<1x8x128xf32, #tpu.memory_space<vmem>>, %arg5: memref<1x1x16x128xf32, #tpu.memory_space<vmem>>, %arg6: memref<8x128xf32, #tpu.memory_space<vmem>>, %arg7: memref<8x128xf32, #tpu.memory_space<vmem>>) attributes {dimension_semantics = [#tpu.dimension_semantics<parallel>, #tpu.dimension_semantics<parallel>, #tpu.dimension_semantics<arbitrary>], iteration_bounds = array<i64: 2, 1, 1>, scalar_prefetch = 0 : i64, scratch_operands = 2 : i64, tpu.core_type = #tpu.core_type<tc>, window_params = [{transform_indices = @transform_0, window_bounds = array<i64: 1, 8, 128>}, {transform_indices = @transform_1, window_bounds = array<i64: 1, 8, 128>}, {transform_indices = @transform_2, window_bounds = array<i64: 1, 1, 16, 128>}]} {
    %c0_i32 = arith.constant 0 : i32
    %0 = arith.cmpi eq, %arg2, %c0_i32 : i32
    %1 = arith.extui %0 : i1 to i32
    %c0_i32_0 = arith.constant 0 : i32
    %2 = arith.cmpi ne, %1, %c0_i32_0 : i32
    scf.if %2 {
      %cst_18 = arith.constant 0.000000e+00 : f32
      %27 = vector.broadcast %cst_18 : f32 to vector<8x128xf32>
      %c0_19 = arith.constant 0 : index
      %c0_20 = arith.constant 0 : index
      %28 = vector.load %arg6[%c0_19, %c0_20] : memref<8x128xf32, #tpu.memory_space<vmem>>, vector<8x128xf32>
      tpu.vector_store %arg6[%c0_19, %c0_20], %27 {strides = array<i32>} : memref<8x128xf32, #tpu.memory_space<vmem>>, vector<8x128xf32>,
      %cst_21 = arith.constant 0.000000e+00 : f32
      %29 = vector.broadcast %cst_21 : f32 to vector<8x128xf32>
      %c0_22 = arith.constant 0 : index
      %c0_23 = arith.constant 0 : index
      %30 = vector.load %arg7[%c0_22, %c0_23] : memref<8x128xf32, #tpu.memory_space<vmem>>, vector<8x128xf32>
      tpu.vector_store %arg7[%c0_22, %c0_23], %29 {strides = array<i32>} : memref<8x128xf32, #tpu.memory_space<vmem>>, vector<8x128xf32>,
    } else {
    }
    %c0 = arith.constant 0 : index
    %c0_1 = arith.constant 0 : index
    %c0_2 = arith.constant 0 : index
    %3 = vector.load %arg3[%c0, %c0_1, %c0_2] : memref<1x8x128xf32, #tpu.memory_space<vmem>>, vector<1x8x128xf32>
    %4 = vector.shape_cast %3 : vector<1x8x128xf32> to vector<8x128xf32>
    %5 = arith.negf %4 : vector<8x128xf32>
    %6 = math.exp %5 : vector<8x128xf32>
    %cst = arith.constant 1.000000e+00 : f32
    %7 = vector.broadcast %cst : f32 to vector<8x128xf32>
    %8 = arith.addf %7, %6 : vector<8x128xf32>
    %9 = arith.divf %7, %8 : vector<8x128xf32>
    %c0_3 = arith.constant 0 : index
    %c0_4 = arith.constant 0 : index
    %c0_5 = arith.constant 0 : index
    %10 = vector.load %arg4[%c0_3, %c0_4, %c0_5] : memref<1x8x128xf32, #tpu.memory_space<vmem>>, vector<1x8x128xf32>
    %11 = vector.shape_cast %10 : vector<1x8x128xf32> to vector<8x128xf32>
    %12 = arith.mulf %9, %11 : vector<8x128xf32>
    %13 = arith.addf %9, %11 : vector<8x128xf32>
    %c0_6 = arith.constant 0 : index
    %c0_7 = arith.constant 0 : index
    %14 = vector.load %arg6[%c0_6, %c0_7] : memref<8x128xf32, #tpu.memory_space<vmem>>, vector<8x128xf32>
    %15 = vector.shape_cast %12 : vector<8x128xf32> to vector<1x8x128xf32>
    %cst_8 = arith.constant dense<0.000000e+00> : vector<8x128xf32>
    %16 = vector.multi_reduction <add>, %15, %cst_8 [0] : vector<1x8x128xf32> to vector<8x128xf32>
    %17 = arith.addf %14, %16 : vector<8x128xf32>
    %c0_9 = arith.constant 0 : index
    %c0_10 = arith.constant 0 : index
    %18 = vector.load %arg6[%c0_9, %c0_10] : memref<8x128xf32, #tpu.memory_space<vmem>>, vector<8x128xf32>
    tpu.vector_store %arg6[%c0_9, %c0_10], %17 {strides = array<i32>} : memref<8x128xf32, #tpu.memory_space<vmem>>, vector<8x128xf32>,
    %c0_11 = arith.constant 0 : index
    %c0_12 = arith.constant 0 : index
    %19 = vector.load %arg7[%c0_11, %c0_12] : memref<8x128xf32, #tpu.memory_space<vmem>>, vector<8x128xf32>
    %20 = vector.shape_cast %13 : vector<8x128xf32> to vector<1x8x128xf32>
    %cst_13 = arith.constant dense<0.000000e+00> : vector<8x128xf32>
    %21 = vector.multi_reduction <add>, %20, %cst_13 [0] : vector<1x8x128xf32> to vector<8x128xf32>
    %22 = arith.addf %19, %21 : vector<8x128xf32>
    %c0_14 = arith.constant 0 : index
    %c0_15 = arith.constant 0 : index
    %23 = vector.load %arg7[%c0_14, %c0_15] : memref<8x128xf32, #tpu.memory_space<vmem>>, vector<8x128xf32>
    tpu.vector_store %arg7[%c0_14, %c0_15], %22 {strides = array<i32>} : memref<8x128xf32, #tpu.memory_space<vmem>>, vector<8x128xf32>,
    %c0_i32_16 = arith.constant 0 : i32
    %24 = arith.cmpi eq, %arg2, %c0_i32_16 : i32
    %25 = arith.extui %24 : i1 to i32
    %c0_i32_17 = arith.constant 0 : i32
    %26 = arith.cmpi ne, %25, %c0_i32_17 : i32
    scf.if %26 {
      %c0_18 = arith.constant 0 : index
      %c0_19 = arith.constant 0 : index
      %27 = vector.load %arg6[%c0_18, %c0_19] : memref<8x128xf32, #tpu.memory_space<vmem>>, vector<8x128xf32>
      %c0_20 = arith.constant 0 : index
      %c0_21 = arith.constant 0 : index
      %c0_22 = arith.constant 0 : index
      %c0_23 = arith.constant 0 : index
      %28 = vector.load %arg5[%c0_20, %c0_21, %c0_22, %c0_23] : memref<1x1x16x128xf32, #tpu.memory_space<vmem>>, vector<1x1x8x128xf32>
      %29 = vector.shape_cast %28 : vector<1x1x8x128xf32> to vector<8x128xf32>
      %30 = vector.shape_cast %27 : vector<8x128xf32> to vector<1x1x8x128xf32>
      tpu.vector_store %arg5[%c0_20, %c0_21, %c0_22, %c0_23], %30 {strides = array<i32>} : memref<1x1x16x128xf32, #tpu.memory_space<vmem>>, vector<1x1x8x128xf32>,
      %c0_24 = arith.constant 0 : index
      %c0_25 = arith.constant 0 : index
      %31 = vector.load %arg7[%c0_24, %c0_25] : memref<8x128xf32, #tpu.memory_space<vmem>>, vector<8x128xf32>
      %c0_26 = arith.constant 0 : index
      %c0_27 = arith.constant 0 : index
      %c8 = arith.constant 8 : index
      %c0_28 = arith.constant 0 : index
      %32 = vector.load %arg5[%c0_26, %c0_27, %c8, %c0_28] : memref<1x1x16x128xf32, #tpu.memory_space<vmem>>, vector<1x1x8x128xf32>
      %33 = vector.shape_cast %32 : vector<1x1x8x128xf32> to vector<8x128xf32>
      %34 = vector.shape_cast %31 : vector<8x128xf32> to vector<1x1x8x128xf32>
      tpu.vector_store %arg5[%c0_26, %c0_27, %c8, %c0_28], %34 {strides = array<i32>} : memref<1x1x16x128xf32, #tpu.memory_space<vmem>>, vector<1x1x8x128xf32>,
    } else {
    }
    return
  }
  func.func @transform_0(%arg0: i32, %arg1: i32, %arg2: i32) -> (i32, i32, i32) {
    %c1_i32 = arith.constant 1 : i32
    %0 = arith.muli %arg1, %c1_i32 : i32
    %1 = arith.addi %0, %arg2 : i32
    %c0_i32 = arith.constant 0 : i32
    %2 = arith.minsi %1, %c0_i32 : i32
    %c0_i32_0 = arith.constant 0 : i32
    %c0_i32_1 = arith.constant 0 : i32
    return %arg0, %2, %c0_i32_0 : i32, i32, i32
  }
  func.func @transform_1(%arg0: i32, %arg1: i32, %arg2: i32) -> (i32, i32, i32) {
    %c1_i32 = arith.constant 1 : i32
    %0 = arith.muli %arg1, %c1_i32 : i32
    %1 = arith.addi %0, %arg2 : i32
    %c0_i32 = arith.constant 0 : i32
    %2 = arith.minsi %1, %c0_i32 : i32
    %c0_i32_0 = arith.constant 0 : i32
    %c0_i32_1 = arith.constant 0 : i32
    return %arg0, %2, %c0_i32_0 : i32, i32, i32
  }
  func.func @transform_2(%arg0: i32, %arg1: i32, %arg2: i32) -> (i32, i32, i32, i32) {
    %c0_i32 = arith.constant 0 : i32
    %c0_i32_0 = arith.constant 0 : i32
    %c0_i32_1 = arith.constant 0 : i32
    return %arg0, %arg1, %c0_i32, %c0_i32_0 : i32, i32, i32, i32
  }
}

</mosaic_0001>

<llo_original>
// kernel: tpu_custom_call.1
$region0: #{tpu_custom_call.1}
  #allocation0 [shape = 'u32[]', space=smem, size = 0x4, offset = 0x4, fixed_abs, tag = 'smem constant byte address 0x4 - core index']
  #allocation1 [shape = 'u32[72,128]{1,0:T(1,128)}', space=vmem, size = 0x9000, scoped, tag = 'internal scratch']
  #allocation2 [shape = 'f32[8,128]{1,0:T(8,128)}', space=vmem, size = 0x1000, scoped, tag = 'scratch operand']
  #allocation3 [shape = 'f32[8,128]{1,0:T(8,128)}', space=vmem, size = 0x1000, scoped, tag = 'scratch operand']
  %s0 = inlined_call_operand.hbm [shape: f32[2,8,128], index: 0, kind: input, shape index: {}]
  %s1 = inlined_call_operand.hbm [shape: f32[2,8,128], index: 1, kind: input, shape index: {}]
  %s2 = inlined_call_operand.hbm [shape: f32[2,1,16,128], index: 2, kind: output, shape index: {}]
  %s3 = sld [smem:[#allocation0]]
  $region57: #{tpu_custom_call.1} parent=0
    _
  %s5 = ssub.s32 1, %s3
  %s6 = scalar_select 0, %s5, %s3
  $region1: #{tpu_custom_call.1} parent=0
    #allocation4 [shape = 'u8[8192]{0}', space=vmem, size = 0x2000, scoped, tag = 'input window, operand 0']
    #allocation5 [shape = 's32[2]{0}', space=sflag, size = 0x8, scoped, tag = 'scoped memory for tpu_custom_call.1']
    #allocation6 [shape = 's32[2]{0}', space=sflag, size = 0x8, scoped, tag = 'scoped memory for tpu_custom_call.1']
    #allocation7 [shape = 'u8[8192]{0}', space=vmem, size = 0x2000, scoped, tag = 'input window, operand 1']
    #allocation8 [shape = 's32[2]{0}', space=sflag, size = 0x8, scoped, tag = 'scoped memory for tpu_custom_call.1']
    #allocation9 [shape = 'u8[16384]{0}', space=vmem, size = 0x4000, scoped, tag = 'output window, operand 0']
    %7 = vsyncpa [#allocation5], 0
    %s8 = scalar_lea.sflag [#allocation5], 1
    %9 = vsyncpa %s8, 0
    %10 = vsyncpa [#allocation8], 0
    %s11 = scalar_lea.sflag [#allocation8], 1
    %12 = vsyncpa %s11, 0
    %13 = vsyncpa [#allocation6], 0
    %s14 = scalar_lea.sflag [#allocation6], 1
    %15 = vsyncpa %s14, 0
    loop: start=0, step=1, limit=4
    $region2: #{tpu_custom_call.1} parent=1 // loop_pre_header
      _
    $region3: #{tpu_custom_call.1} parent=1 // loop_header
      %s17 = sphi 0, %s21
      %p18 = scmp.ge.s32.totalorder %s17, 4
      %s24 = sphi 0, %s43
      %s25 = sphi 0, %s39
      %s26 = sphi 0, %s35
      %s27 = sphi 0, %s24
      %s28 = sphi 0, %s25
      %s29 = sphi 0, %s26
      %s30 = sphi 0, %s27
      %s31 = sphi 0, %s28
      %s32 = sphi 0, %s29
      %s54 = sphi 0, %s56
      %s57 = sphi 0, %s54
      %s58 = sphi 0, %s57
      %s74 = sphi 0, %s58
      %s88 = sphi 0, %s90
      %s91 = sphi 0, %s88
      %s92 = sphi 0, %s91
      %s108 = sphi 0, %s92
      %s116 = sphi 0, %s118
      %s119 = sphi 0, %s116
      %s120 = sphi 0, %s119
      %s136 = sphi 0, %s120
    $region4: #{tpu_custom_call.1} parent=1 // loop_header_branch
      %20 = sbr.rel (%p18) target = $region8
    $region5: #{tpu_custom_call.1} parent=1 // loop_body
      %s22 = ssub.s32 %s17, 1
      %s23 = ssub.s32 %s17, 2
      %s33 = sadd.s32 1, %s26
      %p34 = scmp.ge.s32.totalorder %s33, 1
      %s35 = scalar_select %p34, 0, %s33
      %s36 = sadd.s32 1, %s25
      %s37 = scalar_select %p34, %s36, %s25
      %p38 = scmp.ge.s32.totalorder %s37, 1
      %s39 = scalar_select %p38, 0, %s37
      %s40 = sadd.s32 1, %s24
      %s41 = scalar_select %p38, %s40, %s24
      %p42 = scmp.ge.s32.totalorder %s41, 2
      %s43 = scalar_select %p42, 0, %s41
      %s44 = sadd.s32 %s25, %s26
      %p45 = scmp.lt.s32.totalorder %s44, 0
      %s46 = scalar_select %p45, %s44, 0
      %s47 = sadd.s32 %s39, %s35
      %p48 = scmp.lt.s32.totalorder %s47, 0
      %s49 = scalar_select %p48, %s47, 0
      %s50 = ssub.s32 %s24, %s43
      %s51 = ssub.s32 %s46, %s49
      %s52 = sor.u32 %s50, %s51
      %p53 = scmp.eq.s32.totalorder %s52, 0
      %s55 = sadd.s32 %s54, 1
      %s56 = scalar_select %p53, %s54, %s55
      %p59 = pneg %p53
      %p60 = scmp.eq.s32.totalorder %s17, 1
      %p61 = por %p59, %p60
      %p62 = scmp.ne.s32.totalorder %s54, %s57
      %p63 = scmp.eq.s32.totalorder %s17, 0
      %p64 = por %p62, %p63
      %p65 = scmp.ne.s32.totalorder %s54, %s57
      %p66 = scmp.eq.s32.totalorder %s22, 1
      %p67 = por %p65, %p66
      %p68 = scmp.ne.s32.totalorder %s57, %s58
      %p69 = scmp.eq.s32.totalorder %s22, 0
      %p70 = por %p68, %p69
      %p71 = scmp.ne.s32.totalorder %s57, %s58
      %p72 = scmp.eq.s32.totalorder %s23, 1
      %p73 = por %p71, %p72
      %p75 = scmp.ne.s32.totalorder %s58, %s74
      %p76 = scmp.eq.s32.totalorder %s23, 0
      %p77 = por %p75, %p76
      %s78 = sadd.s32 %s25, %s26
      %p79 = scmp.lt.s32.totalorder %s78, 0
      %s80 = scalar_select %p79, %s78, 0
      %s81 = sadd.s32 %s39, %s35
      %p82 = scmp.lt.s32.totalorder %s81, 0
      %s83 = scalar_select %p82, %s81, 0
      %s84 = ssub.s32 %s24, %s43
      %s85 = ssub.s32 %s80, %s83
      %s86 = sor.u32 %s84, %s85
      %p87 = scmp.eq.s32.totalorder %s86, 0
      %s89 = sadd.s32 %s88, 1
      %s90 = scalar_select %p87, %s88, %s89
      %p93 = pneg %p87
      %p94 = scmp.eq.s32.totalorder %s17, 1
      %p95 = por %p93, %p94
      %p96 = scmp.ne.s32.totalorder %s88, %s91
      %p97 = scmp.eq.s32.totalorder %s17, 0
      %p98 = por %p96, %p97
      %p99 = scmp.ne.s32.totalorder %s88, %s91
      %p100 = scmp.eq.s32.totalorder %s22, 1
      %p101 = por %p99, %p100
      %p102 = scmp.ne.s32.totalorder %s91, %s92
      %p103 = scmp.eq.s32.totalorder %s22, 0
      %p104 = por %p102, %p103
      %p105 = scmp.ne.s32.totalorder %s91, %s92
      %p106 = scmp.eq.s32.totalorder %s23, 1
      %p107 = por %p105, %p106
      %p109 = scmp.ne.s32.totalorder %s92, %s108
      %p110 = scmp.eq.s32.totalorder %s23, 0
      %p111 = por %p109, %p110
      %s112 = ssub.s32 %s24, %s43
      %s113 = ssub.s32 %s25, %s39
      %s114 = sor.u32 %s112, %s113
      %p115 = scmp.eq.s32.totalorder %s114, 0
      %s117 = sadd.s32 %s116, 1
      %s118 = scalar_select %p115, %s116, %s117
      %p121 = pneg %p115
      %p122 = scmp.eq.s32.totalorder %s17, 1
      %p123 = por %p121, %p122
      %p124 = scmp.ne.s32.totalorder %s116, %s119
      %p125 = scmp.eq.s32.totalorder %s17, 0
      %p126 = por %p124, %p125
      %p127 = scmp.ne.s32.totalorder %s116, %s119
      %p128 = scmp.eq.s32.totalorder %s22, 1
      %p129 = por %p127, %p128
      %p130 = scmp.ne.s32.totalorder %s119, %s120
      %p131 = scmp.eq.s32.totalorder %s22, 0
      %p132 = por %p130, %p131
      %p133 = scmp.ne.s32.totalorder %s119, %s120
      %p134 = scmp.eq.s32.totalorder %s23, 1
      %p135 = por %p133, %p134
      %p137 = scmp.ne.s32.totalorder %s120, %s136
      %p138 = scmp.eq.s32.totalorder %s23, 0
      %p139 = por %p137, %p138
      %p140 = scmp.le.s32.totalorder 1, %s17
      %p141 = scmp.lt.s32.totalorder %s17, 3
      %p142 = pnand %p140, %p141
      %p143 = pneg %p142
      // Predicated region
      $region9: #{tpu_custom_call.1} parent=5 // pred_check
        _
      $region10: #{tpu_custom_call.1} parent=5 // pred_check_branch
        %145 = sbr.rel (%p142) target = $region12
      $region11: #{tpu_custom_call.1} parent=5 // pred_region
        %s146 = ssub.s32 %s17, 1
      $region12: #{tpu_custom_call.1} parent=5 // pred_fallthru
        _
      %p147 = scmp.lt.s32.totalorder %s17, 2
      // Predicated region
      $region13: #{tpu_custom_call.1} parent=5 // pred_check
        %p148 = pneg %p147
      $region14: #{tpu_custom_call.1} parent=5 // pred_check_branch
        %150 = sbr.rel (%p148) target = $region16
      $region15: #{tpu_custom_call.1} parent=5 // pred_region
        // Predicated region
        $region17: #{tpu_custom_call.1} parent=15 // pred_check
          %p151 = pneg %p64
        $region18: #{tpu_custom_call.1} parent=15 // pred_check_branch
          %153 = sbr.rel (%p151) target = $region20
        $region19: #{tpu_custom_call.1} parent=15 // pred_region
          %s154 = sand.u32 %s54, 1
          %s155 = scalar_lea.sflag [#allocation5], %s154
          %s156 = sand.u32 %s54, 1
          %s157 = smul.addr %s156, 8
          %s158 = scalar_lea.vmem [#allocation4], %s157
          %s159 = sadd.s32 %s25, %s26
          %p160 = scmp.lt.s32.totalorder %s159, 0
          %s161 = scalar_select %p160, %s159, 0
          %163 = vsyncadd %s155, 0
          %s164 = sadd.s32 %s161, %s24
          %s165 = smul.addr %s164, 8
          %s166 = scalar_lea.hbm %s0, %s165
          %s168 = sshll.u32 %s166, 4
          %s169 = int_to_ptr.hbm [resolvable:$true] %s168
          %s170 = sshll.u32 %s158, 4
          %s171 = int_to_ptr.vmem [resolvable:$true] %s170
          %173 = dma.hbm_to_vmem [thread:$0]  %s169, 128, %s171, %s155
        $region20: #{tpu_custom_call.1} parent=15 // pred_fallthru
          _
        // Predicated region
        $region21: #{tpu_custom_call.1} parent=15 // pred_check
          %p174 = pneg %p98
        $region22: #{tpu_custom_call.1} parent=15 // pred_check_branch
          %176 = sbr.rel (%p174) target = $region24
        $region23: #{tpu_custom_call.1} parent=15 // pred_region
          %s177 = sand.u32 %s88, 1
          %s178 = scalar_lea.sflag [#allocation8], %s177
          %s179 = sand.u32 %s88, 1
          %s180 = smul.addr %s179, 8
          %s181 = scalar_lea.vmem [#allocation7], %s180
          %s182 = sadd.s32 %s25, %s26
          %p183 = scmp.lt.s32.totalorder %s182, 0
          %s184 = scalar_select %p183, %s182, 0
          %186 = vsyncadd %s178, 0
          %s187 = sadd.s32 %s184, %s24
          %s188 = smul.addr %s187, 8
          %s189 = scalar_lea.hbm %s1, %s188
          %s191 = sshll.u32 %s189, 4
          %s192 = int_to_ptr.hbm [resolvable:$true] %s191
          %s193 = sshll.u32 %s181, 4
          %s194 = int_to_ptr.vmem [resolvable:$true] %s193
          %196 = dma.hbm_to_vmem [thread:$0]  %s192, 128, %s194, %s178
        $region24: #{tpu_custom_call.1} parent=15 // pred_fallthru
          _
      $region16: #{tpu_custom_call.1} parent=5 // pred_fallthru
        _
      %p197 = scmp.le.s32.totalorder 1, %s17
      %p198 = scmp.lt.s32.totalorder %s17, 3
      %p199 = pnand %p197, %p198
      %p200 = pneg %p199
      // Predicated region
      $region25: #{tpu_custom_call.1} parent=5 // pred_check
        _
      $region26: #{tpu_custom_call.1} parent=5 // pred_check_branch
        %202 = sbr.rel (%p199) target = $region28
      $region27: #{tpu_custom_call.1} parent=5 // pred_region
        %s203 = ssub.s32 %s17, 1
        %s204 = sand.u32 %s57, 1
        %s205 = scalar_lea.sflag [#allocation5], %s204
        %s206 = sand.u32 %s57, 1
        %s207 = smul.addr %s206, 8
        %s208 = scalar_lea.vmem [#allocation4], %s207
        // Predicated region
        $region29: #{tpu_custom_call.1} parent=27 // pred_check
          %p209 = pneg %p70
        $region30: #{tpu_custom_call.1} parent=27 // pred_check_branch
          %211 = sbr.rel (%p209) target = $region32
        $region31: #{tpu_custom_call.1} parent=27 // pred_region
          %213 = dma.done %s205, 128
        $region32: #{tpu_custom_call.1} parent=27 // pred_fallthru
          _
        %s214 = sand.u32 %s91, 1
        %s215 = scalar_lea.sflag [#allocation8], %s214
        %s216 = sand.u32 %s91, 1
        %s217 = smul.addr %s216, 8
        %s218 = scalar_lea.vmem [#allocation7], %s217
        // Predicated region
        $region33: #{tpu_custom_call.1} parent=27 // pred_check
          %p219 = pneg %p104
        $region34: #{tpu_custom_call.1} parent=27 // pred_check_branch
          %221 = sbr.rel (%p219) target = $region36
        $region35: #{tpu_custom_call.1} parent=27 // pred_region
          %223 = dma.done %s215, 128
        $region36: #{tpu_custom_call.1} parent=27 // pred_fallthru
          _
        %s224 = sand.u32 %s57, 1
        %s225 = scalar_lea.sflag [#allocation5], %s224
        %s226 = sand.u32 %s57, 1
        %s227 = smul.addr %s226, 8
        %s228 = scalar_lea.vmem [#allocation4], %s227
        %p229 = pneg %p70
        %p230 = pneg %p67
        %s231 = sand.u32 %s91, 1
        %s232 = scalar_lea.sflag [#allocation8], %s231
        %s233 = sand.u32 %s91, 1
        %s234 = smul.addr %s233, 8
        %s235 = scalar_lea.vmem [#allocation7], %s234
        %p236 = pneg %p104
        %p237 = pneg %p101
        %p238 = pneg %p132
        %p239 = pneg %p129
        %s240 = sand.u32 %s119, 1
        %s241 = scalar_lea.sflag [#allocation6], %s240
        %s242 = sand.u32 %s119, 1
        %s243 = smul.addr %s242, 16
        %s244 = scalar_lea.vmem [#allocation9], %s243
        %s245 = sadd.s32 %s28, %s29
        %p246 = scmp.lt.s32.totalorder %s245, 0
        %s247 = scalar_select %p246, %s245, 0
        %s248 = sadd.s32 %s28, %s29
        %p249 = scmp.lt.s32.totalorder %s248, 0
        %s250 = scalar_select %p249, %s248, 0
        %p251 = scmp.eq.s32.totalorder %s29, 0
        // Predicated region
        $region37: #{tpu_custom_call.1} parent=27 // pred_check
          %p252 = pneg %p251
        $region38: #{tpu_custom_call.1} parent=27 // pred_check_branch
          %254 = sbr.rel (%p252) target = $region40
        $region39: #{tpu_custom_call.1} parent=27 // pred_region
          %255 = vst [vmem:[#allocation2] sm:$0xff] 0.0
          %256 = vst [vmem:[#allocation3] sm:$0xff] 0.0
        $region40: #{tpu_custom_call.1} parent=27 // pred_fallthru
          _
        %v257 = vld [vmem:[%s208] sm:$0xff]
        %v258 = vxor.u32 %v257, 2147483648
        %v259 = vmul.f32 %v258, 1.442695
        %v260 = vpow.pop %v259
        %v261 = vadd.f32 %v260, 1.0
        %v262 = vrcp.pop %v261
        %v263 = vmul.f32 %v261, %v262
        %v264 = vsub.f32 1.0, %v263
        %v265 = vmul.f32 %v262, %v264
        %v266 = vadd.f32 %v262, %v265
        %vm267 = vweird.f32 %v261
        %vm268 = vweird.f32 %v262
        %vm269 = vmor %vm267, %vm268
        %v270 = vsel %vm269, %v262, %v266
        %v271 = vand.u32 2147483647, %v261
        %vm272 = vcmp.eq.f32.partialorder %v271, 8.507059e+37
        %v273 = vand.u32 %v261, 2147483648
        %v274 = vor.u32 1.1754944e-38, %v273
        %v275 = vsel %vm272, %v274, %v270
        %v276 = vmul.f32 1.0, %v275
        %v277 = vld [vmem:[%s218] sm:$0xff]
        %v278 = vmul.f32 %v276, %v277
        %v279 = vadd.f32 %v276, %v277
        %v280 = vld [vmem:[#allocation2] sm:$0xff]
        %v281 = vadd.f32 %v278, 0.0
        %v282 = vadd.f32 %v280, %v281
        %283 = vst [vmem:[#allocation2] sm:$0xff] %v282
        %v284 = vld [vmem:[#allocation3] sm:$0xff]
        %v285 = vadd.f32 %v279, 0.0
        %v286 = vadd.f32 %v284, %v285
        %287 = vst [vmem:[#allocation3] sm:$0xff] %v286
        // Predicated region
        $region41: #{tpu_custom_call.1} parent=27 // pred_check
          %p288 = pneg %p251
        $region42: #{tpu_custom_call.1} parent=27 // pred_check_branch
          %290 = sbr.rel (%p288) target = $region44
        $region43: #{tpu_custom_call.1} parent=27 // pred_region
          %v291 = vld [vmem:[#allocation2] sm:$0xff]
          %292 = vst [vmem:[%s244] sm:$0xff] %v291
          %v293 = vld [vmem:[#allocation3] sm:$0xff]
          %294 = vst [vmem:[%s244 + $0x8] sm:$0xff] %v293
        $region44: #{tpu_custom_call.1} parent=27 // pred_fallthru
          _
        %s295 = sand.u32 %s119, 1
        %s296 = scalar_lea.sflag [#allocation6], %s295
        %s297 = sand.u32 %s119, 1
        %s298 = smul.addr %s297, 16
        %s299 = scalar_lea.vmem [#allocation9], %s298
        // Predicated region
        $region45: #{tpu_custom_call.1} parent=27 // pred_check
          %p300 = pneg %p129
        $region46: #{tpu_custom_call.1} parent=27 // pred_check_branch
          %302 = sbr.rel (%p300) target = $region48
        $region47: #{tpu_custom_call.1} parent=27 // pred_region
          %304 = vsyncadd %s296, 0
          %s305 = smul.addr %s28, 2
          %s306 = smul.addr %s27, 2
          %s307 = sadd.s32 %s305, %s306
          %s308 = smul.addr %s307, 8
          %s309 = scalar_lea.hbm %s2, %s308
          %s310 = sshll.u32 %s299, 4
          %s311 = int_to_ptr.vmem [resolvable:$true] %s310
          %s312 = sshll.u32 %s309, 4
          %s313 = int_to_ptr.hbm [resolvable:$true] %s312
          %318 = dma.vmem_to_hbm [thread:$0]  %s311, 256, %s313, %s296, 128, 128, 8
        $region48: #{tpu_custom_call.1} parent=27 // pred_fallthru
          _
      $region28: #{tpu_custom_call.1} parent=5 // pred_fallthru
        _
      %p319 = scmp.le.s32.totalorder 2, %s17
      // Predicated region
      $region49: #{tpu_custom_call.1} parent=5 // pred_check
        %p320 = pneg %p319
      $region50: #{tpu_custom_call.1} parent=5 // pred_check_branch
        %322 = sbr.rel (%p320) target = $region52
      $region51: #{tpu_custom_call.1} parent=5 // pred_region
        %s323 = ssub.s32 %s17, 2
        // Predicated region
        $region53: #{tpu_custom_call.1} parent=51 // pred_check
          %p324 = pneg %p135
        $region54: #{tpu_custom_call.1} parent=51 // pred_check_branch
          %326 = sbr.rel (%p324) target = $region56
        $region55: #{tpu_custom_call.1} parent=51 // pred_region
          %s327 = sand.u32 %s120, 1
          %s328 = scalar_lea.sflag [#allocation6], %s327
          %s329 = sand.u32 %s120, 1
          %s330 = smul.addr %s329, 16
          %s331 = scalar_lea.vmem [#allocation9], %s330
          %333 = dma.done %s328, 256
        $region56: #{tpu_custom_call.1} parent=51 // pred_fallthru
          _
      $region52: #{tpu_custom_call.1} parent=5 // pred_fallthru
        _
    $region6: #{tpu_custom_call.1} parent=1 // loop_footer
      %s21 = sadd.s32 1, %s17
    $region7: #{tpu_custom_call.1} parent=1 // loop_footer_branch
      %16 = sbr.rel target = $region3
    $region8: #{tpu_custom_call.1} parent=1 // loop_exit
      _
    %334 = vsyncpa [#allocation5], 1
    %s335 = scalar_lea.sflag [#allocation5], 1
    %336 = vsyncpa %s335, 1
    %337 = vsyncpa [#allocation8], 1
    %s338 = scalar_lea.sflag [#allocation8], 1
    %339 = vsyncpa %s338, 1
    %340 = vsyncpa [#allocation6], 1
    %s341 = scalar_lea.sflag [#allocation6], 1
    %342 = vsyncpa %s341, 1

</llo_original>
